<compile_context>
chip_gen: v7x
topology: tpu7x:2x2x1
jax: 0.10.0
libtpu: 0.0.40
codegen_flags: <defaults>
</compile_context>

<pallas_src>
import jax
import jax.numpy as jnp
from jax.experimental import pallas as pl
from jax.experimental.pallas import tpu as pltpu


def _slice_attn_kernel_vpu(x_ref, w1_ref, w2_ref, o_ref):
    """VPU path for tiny hidden dims (H = D // reduction, typically 1-8).

    x_ref: (TM, D) row tile; w1_ref: (H, D) fc1 weight (lane-dense rows);
    w2_ref: (1, H) fc2 weight; o_ref: (TM, D).
    """
    x = x_ref[...]                       # single live copy of the tile
    w1 = w1_ref[...]
    w2 = w2_ref[...]
    H = w1.shape[0]
    logit = jnp.zeros((x.shape[0], 1), jnp.float32)
    for j in range(H):                   # unrolled at trace time (H is tiny)
        # fc1 row j: lane reduction (XLU); promotes to f32 for accumulation.
        hj = jnp.sum(x * w1[j:j + 1, :], axis=-1, keepdims=True)   # (TM, 1)
        hj = jnp.maximum(hj, 0.0)                                   # ReLU
        logit = logit + hj * w2[:, j:j + 1]                         # fc2
    # Sigmoid: exp on the EUP; approx reciprocal also lands on the EUP slot,
    # keeping VALU free.  Only touches a (TM, 1) sliver anyway.
    attn = pl.reciprocal(1.0 + jnp.exp(-logit), approx=True)
    o_ref[...] = (attn * x).astype(o_ref.dtype)          # lane-dense (TM, D) store


def _slice_attn_kernel_mxu(x_ref, w1t_ref, w2_ref, o_ref):
    """MXU fallback for larger hidden dims (H >= 64).

    x_ref: (TM, D); w1t_ref: (D, H) = fc1.weight^T (cast to x.dtype in wrapper
    so bf16 inputs take the fast bf16-in / f32-accumulate MXU path);
    w2_ref: (1, H).
    """
    x = x_ref[...]
    h = jnp.dot(x, w1t_ref[...], preferred_element_type=jnp.float32)  # (TM, H)
    h = jnp.maximum(h, 0.0)
    # fc2 as a VPU/XLU reduce (avoids a second, 1-lane-wide MXU round trip).
    logit = jnp.sum(h * w2_ref[...].astype(jnp.float32),
                    axis=-1, keepdims=True)                           # (TM, 1)
    attn = pl.reciprocal(1.0 + jnp.exp(-logit), approx=True)
    o_ref[...] = (attn * x).astype(o_ref.dtype)


def _round_up(n, m):
    return ((n + m - 1) // m) * m


def _pick_tm(rows, feature_dim, itemsize, *, target=4096, buf_budget=24 << 20):
    """Row-tile size.

    As large as possible (amortize ~0.35 us/grid-step overhead), subject to:
      (a) pipeline buffers (x-in + out, double-buffered => 4*tm*D*itemsize)
          stay under `buf_budget` (24 MiB: 2x headroom under the 48 MiB
          vmem_limit, itself safe on v7x's 64 MiB physical VMEM);
      (b) tm is a multiple of the dtype's sublane tile (8 f32 / 16 bf16 /
          32 int8) so streaming loads/stores stay unmasked;
      (c) rows split into >= 2 roughly-equal blocks so the "parallel" grid
          axis shards evenly across both v7x TensorCores.
    """
    sub = max(8, 32 // itemsize)                           # sublane tile for dtype
    cap = max(sub, (buf_budget // (4 * feature_dim * itemsize)) // sub * sub)
    tgt = min(target, cap)
    n_blocks = max(2, pl.cdiv(rows, tgt))                  # >= 2 for megacore
    tm = _round_up(pl.cdiv(rows, n_blocks), sub)           # balanced split
    return max(sub, min(tm, cap))


def slice_attention_block(x, w1, w2, *, tm=None):
    """x: (B, S, D) float.  w1: (H, D) = fc1.weight.  w2: (1, H) = fc2.weight."""
    B, S, D = x.shape
    H, D_w = w1.shape
    assert D_w == D and w2.shape == (1, H)

    rows = B * S
    itemsize = jnp.dtype(x.dtype).itemsize
    if tm is None:
        tm = _pick_tm(rows, D, itemsize)

    n_blocks = pl.cdiv(rows, tm)
    x2d = x.reshape(rows, D)        # contiguous view: no extra HBM traffic

    if H >= 64:
        kernel = _slice_attn_kernel_mxu
        w1_arg = jnp.transpose(w1).astype(x.dtype)         # (D, H) for the MXU
        w1_spec = pl.BlockSpec((D, H), lambda i: (0, 0))
    else:
        kernel = _slice_attn_kernel_vpu
        w1_arg = w1                                        # (H, D): lane-dense rows
        w1_spec = pl.BlockSpec((H, D), lambda i: (0, 0))

    out2d = pl.pallas_call(
        kernel,
        out_shape=jax.ShapeDtypeStruct((rows, D), x.dtype),
        grid_spec=pltpu.PrefetchScalarGridSpec(
            num_scalar_prefetch=0,
            grid=(n_blocks,),
            in_specs=[
                pl.BlockSpec((tm, D), lambda i: (i, 0)),   # streaming row tile of x
                w1_spec,                                    # resident fc1 weight
                pl.BlockSpec((1, H), lambda i: (0, 0)),     # resident fc2 weight
            ],
            # Partial last block: OOB output rows are dropped by Pallas; OOB
            # input garbage only feeds those dropped rows (rows independent).
            out_specs=pl.BlockSpec((tm, D), lambda i: (i, 0)),
        ),
        compiler_params=pltpu.CompilerParams(
            # Rows are independent -> megacore-shard across TCs (v7x).
            dimension_semantics=("parallel",),
            # 2x headroom over the 24 MiB buffer budget; < 64 MiB v7x VMEM,
            # and overrides v5e's 16 MiB scoped default so big tiles compile.
            vmem_limit_bytes=48 * 1024 * 1024,
        ),
    )(x2d, w1_arg, w2)

    return out2d.reshape(B, S, D)


def _reference(x, w1, w2):
    hp = jax.lax.Precision.HIGHEST
    h = jnp.maximum(jnp.einsum("bsd,hd->bsh", x, w1, precision=hp), 0.0)
    logit = jnp.einsum("bsh,oh->bso", h, w2, precision=hp)     # (B, S, 1)
    return jax.nn.sigmoid(logit) * x


if __name__ == "__main__":
    # Small shapes consistent with the module: feature_dim=256, reduction=128 -> H=2.
    # S=7 makes B*S=14 rows: with the forced >=2-block split (tm=8) this
    # exercises the partial-final-block (no-pad) path.
    B, S, D, RED = 2, 7, 256, 128
    H = D // RED

    key = jax.random.PRNGKey(0)
    kx, k1, k2 = jax.random.split(key, 3)

    x = jax.random.normal(kx, (B, S, D), dtype=jnp.float32)
    # Deterministic synthetic weights (torch Linear weight shapes: (out, in))
    w1 = jax.random.normal(k1, (H, D), dtype=jnp.float32) * 0.05   # fc1.weight
    w2 = jax.random.normal(k2, (1, H), dtype=jnp.float32) * 0.05   # fc2.weight

    out = slice_attention_block(x, w1, w2)
    out = jax.block_until_ready(out)

    ref = _reference(x, w1, w2)
    assert out.shape == (B, S, D)
    # Tolerance loosened slightly vs. exact f32 to accommodate the EUP
    # approx-reciprocal in the sigmoid.
    assert jnp.allclose(out, ref, atol=2e-3, rtol=2e-3), "mismatch vs reference"

    print("KERNEL_OK")
</pallas_src>

<mosaic_0001>
module attributes {stable_mosaic.version = 11 : i64} {
  func.func @_slice_attn_kernel_vpu(%arg0: i32, %arg1: memref<8x256xf32, #tpu.memory_space<vmem>>, %arg2: memref<2x256xf32, #tpu.memory_space<vmem>>, %arg3: memref<1x2xf32, #tpu.memory_space<vmem>>, %arg4: memref<8x256xf32, #tpu.memory_space<vmem>>) attributes {dimension_semantics = [#tpu.dimension_semantics<parallel>], iteration_bounds = array<i64: 2>, scalar_prefetch = 0 : i64, scratch_operands = 0 : i64, tpu.core_type = #tpu.core_type<tc>, window_params = [{transform_indices = @transform_0, window_bounds = array<i64: 8, 256>}, {pipeline_mode = #tpu.pipeline_mode<synchronous>, transform_indices = @transform_1, window_bounds = array<i64: 2, 256>}, {pipeline_mode = #tpu.pipeline_mode<synchronous>, transform_indices = @transform_2, window_bounds = array<i64: 1, 2>}, {transform_indices = @transform_3, window_bounds = array<i64: 8, 256>}]} {
    %c0 = arith.constant 0 : index
    %c0_0 = arith.constant 0 : index
    %0 = vector.load %arg1[%c0, %c0_0] : memref<8x256xf32, #tpu.memory_space<vmem>>, vector<8x256xf32>
    %c0_1 = arith.constant 0 : index
    %c0_2 = arith.constant 0 : index
    %1 = vector.load %arg2[%c0_1, %c0_2] : memref<2x256xf32, #tpu.memory_space<vmem>>, vector<2x256xf32>
    %c0_3 = arith.constant 0 : index
    %c0_4 = arith.constant 0 : index
    %2 = vector.load %arg3[%c0_3, %c0_4] : memref<1x2xf32, #tpu.memory_space<vmem>>, vector<1x2xf32>
    %cst = arith.constant 0.000000e+00 : f32
    %3 = vector.broadcast %cst : f32 to vector<8x1xf32>
    %4 = vector.extract_strided_slice %1 {offsets = [0, 0], sizes = [1, 256], strides = [1, 1]} : vector<2x256xf32> to vector<1x256xf32>
    %5 = vector.broadcast %4 : vector<1x256xf32> to vector<8x256xf32>
    %6 = arith.mulf %0, %5 : vector<8x256xf32>
    %cst_5 = arith.constant dense<0.000000e+00> : vector<8xf32>
    %7 = vector.multi_reduction <add>, %6, %cst_5 [1] : vector<8x256xf32> to vector<8xf32>
    %8 = vector.shape_cast %7 : vector<8xf32> to vector<8x1xf32>
    %cst_6 = arith.constant 0.000000e+00 : f32
    %9 = vector.broadcast %cst_6 : f32 to vector<8x1xf32>
    %10 = arith.maximumf %8, %9 : vector<8x1xf32>
    %11 = vector.extract_strided_slice %2 {offsets = [0, 0], sizes = [1, 1], strides = [1, 1]} : vector<1x2xf32> to vector<1x1xf32>
    %12 = vector.broadcast %11 : vector<1x1xf32> to vector<8x1xf32>
    %13 = arith.mulf %10, %12 : vector<8x1xf32>
    %14 = arith.addf %3, %13 : vector<8x1xf32>
    %15 = vector.extract_strided_slice %1 {offsets = [1, 0], sizes = [1, 256], strides = [1, 1]} : vector<2x256xf32> to vector<1x256xf32>
    %16 = vector.broadcast %15 : vector<1x256xf32> to vector<8x256xf32>
    %17 = arith.mulf %0, %16 : vector<8x256xf32>
    %cst_7 = arith.constant dense<0.000000e+00> : vector<8xf32>
    %18 = vector.multi_reduction <add>, %17, %cst_7 [1] : vector<8x256xf32> to vector<8xf32>
    %19 = vector.shape_cast %18 : vector<8xf32> to vector<8x1xf32>
    %cst_8 = arith.constant 0.000000e+00 : f32
    %20 = vector.broadcast %cst_8 : f32 to vector<8x1xf32>
    %21 = arith.maximumf %19, %20 : vector<8x1xf32>
    %22 = vector.extract_strided_slice %2 {offsets = [0, 1], sizes = [1, 1], strides = [1, 1]} : vector<1x2xf32> to vector<1x1xf32>
    %23 = vector.broadcast %22 : vector<1x1xf32> to vector<8x1xf32>
    %24 = arith.mulf %21, %23 : vector<8x1xf32>
    %25 = arith.addf %14, %24 : vector<8x1xf32>
    %cst_9 = arith.constant 0.000000e+00 : f32
    %26 = vector.broadcast %cst_9 : f32 to vector<8x1xf32>
    %27 = arith.subf %26, %25 : vector<8x1xf32>
    %28 = math.exp %27 : vector<8x1xf32>
    %cst_10 = arith.constant 1.000000e+00 : f32
    %29 = vector.broadcast %cst_10 : f32 to vector<8x1xf32>
    %30 = arith.addf %29, %28 : vector<8x1xf32>
    %31 = tpu.reciprocal %30 {approx = true} : vector<8x1xf32> -> vector<8x1xf32>
    %32 = vector.broadcast %31 : vector<8x1xf32> to vector<8x256xf32>
    %33 = arith.mulf %32, %0 : vector<8x256xf32>
    %c0_11 = arith.constant 0 : index
    %c0_12 = arith.constant 0 : index
    %34 = vector.load %arg4[%c0_11, %c0_12] : memref<8x256xf32, #tpu.memory_space<vmem>>, vector<8x256xf32>
    tpu.vector_store %arg4[%c0_11, %c0_12], %33 {strides = array<i32>} : memref<8x256xf32, #tpu.memory_space<vmem>>, vector<8x256xf32>,
    return
  }
  func.func @transform_0(%arg0: i32) -> (i32, i32) {
    %c0_i32 = arith.constant 0 : i32
    %c0_i32_0 = arith.constant 0 : i32
    return %arg0, %c0_i32 : i32, i32
  }
  func.func @transform_1(%arg0: i32) -> (i32, i32) {
    %c0_i32 = arith.constant 0 : i32
    %c0_i32_0 = arith.constant 0 : i32
    %c0_i32_1 = arith.constant 0 : i32
    return %c0_i32, %c0_i32_0 : i32, i32
  }
  func.func @transform_2(%arg0: i32) -> (i32, i32) {
    %c0_i32 = arith.constant 0 : i32
    %c0_i32_0 = arith.constant 0 : i32
    %c0_i32_1 = arith.constant 0 : i32
    return %c0_i32, %c0_i32_0 : i32, i32
  }
  func.func @transform_3(%arg0: i32) -> (i32, i32) {
    %c0_i32 = arith.constant 0 : i32
    %c0_i32_0 = arith.constant 0 : i32
    return %arg0, %c0_i32 : i32, i32
  }
}

</mosaic_0001>

<llo_original>
// kernel: tpu_custom_call.1
$region0: #{tpu_custom_call.1}
  #allocation0 [shape = 'u32[]', space=smem, size = 0x4, offset = 0x4, fixed_abs, tag = 'smem constant byte address 0x4 - core index']
  #allocation1 [shape = 'u32[144,128]{1,0:T(1,128)}', space=vmem, size = 0x12000, scoped, tag = 'internal scratch']
  %s0 = inlined_call_operand.hbm [shape: f32[14,256], index: 0, kind: input, shape index: {}]
  %s1 = inlined_call_operand.hbm [shape: f32[2,256], index: 1, kind: input, shape index: {}]
  %s2 = inlined_call_operand.vmem [shape: f32[1,2], index: 2, kind: input, shape index: {}]
  %s3 = inlined_call_operand.hbm [shape: f32[14,256], index: 3, kind: output, shape index: {}]
  %s4 = sld [smem:[#allocation0]]
  $region53: #{tpu_custom_call.1} parent=0
    _
  %s6 = ssub.s32 1, %s4
  %s7 = scalar_select 0, %s6, %s4
  $region1: #{tpu_custom_call.1} parent=0
    #allocation2 [shape = 'u8[16384]{0}', space=vmem, size = 0x4000, scoped, tag = 'input window, operand 0']
    #allocation3 [shape = 's32[2]{0}', space=sflag, size = 0x8, scoped, tag = 'scoped memory for tpu_custom_call.1']
    #allocation4 [shape = 's32[2]{0}', space=sflag, size = 0x8, scoped, tag = 'scoped memory for tpu_custom_call.1']
    #allocation5 [shape = 'u8[2048]{0}', space=vmem, size = 0x800, scoped, tag = 'input window, operand 1, single buffered']
    #allocation6 [shape = 's32[1]{0}', space=sflag, size = 0x4, scoped, tag = 'scoped memory for tpu_custom_call.1']
    #allocation7 [shape = 'u8[16384]{0}', space=vmem, size = 0x4000, scoped, tag = 'output window, operand 0']
    %8 = vsyncpa [#allocation3], 0
    %s9 = scalar_lea.sflag [#allocation3], 1
    %10 = vsyncpa %s9, 0
    %11 = vsyncpa [#allocation6], 0
    %12 = vsyncpa [#allocation4], 0
    %s13 = scalar_lea.sflag [#allocation4], 1
    %14 = vsyncpa %s13, 0
    loop: start=0, step=1, limit=4
    $region2: #{tpu_custom_call.1} parent=1 // loop_pre_header
      _
    $region3: #{tpu_custom_call.1} parent=1 // loop_header
      %s16 = sphi 0, %s20
      %p17 = scmp.ge.s32.totalorder %s16, 4
      %s26 = sphi 0, %s28
      %s29 = sphi 0, %s26
      %s30 = sphi 0, %s29
      %s46 = sphi 0, %s30
      %s50 = sphi 0, %s50
      %s52 = sphi 0, %s50
      %s53 = sphi 0, %s52
      %s67 = sphi 0, %s53
      %s71 = sphi 0, %s71
      %s73 = sphi 0, %s71
      %s74 = sphi 0, %s73
      %s88 = sphi 0, %s74
      %s94 = sphi 0, %s96
      %s97 = sphi 0, %s94
      %s98 = sphi 0, %s97
      %s114 = sphi 0, %s98
    $region4: #{tpu_custom_call.1} parent=1 // loop_header_branch
      %19 = sbr.rel (%p17) target = $region8
    $region5: #{tpu_custom_call.1} parent=1 // loop_body
      %s21 = ssub.s32 %s16, 1
      %s22 = ssub.s32 %s16, 2
      %s23 = sadd.s32 %s16, 1
      %s24 = ssub.s32 %s16, %s23
      %p25 = scmp.eq.s32.totalorder %s24, 0
      %s27 = sadd.s32 %s26, 1
      %s28 = scalar_select %p25, %s26, %s27
      %p31 = pneg %p25
      %p32 = scmp.eq.s32.totalorder %s16, 1
      %p33 = por %p31, %p32
      %p34 = scmp.ne.s32.totalorder %s26, %s29
      %p35 = scmp.eq.s32.totalorder %s16, 0
      %p36 = por %p34, %p35
      %p37 = scmp.ne.s32.totalorder %s26, %s29
      %p38 = scmp.eq.s32.totalorder %s21, 1
      %p39 = por %p37, %p38
      %p40 = scmp.ne.s32.totalorder %s29, %s30
      %p41 = scmp.eq.s32.totalorder %s21, 0
      %p42 = por %p40, %p41
      %p43 = scmp.ne.s32.totalorder %s29, %s30
      %p44 = scmp.eq.s32.totalorder %s22, 1
      %p45 = por %p43, %p44
      %p47 = scmp.ne.s32.totalorder %s30, %s46
      %p48 = scmp.eq.s32.totalorder %s22, 0
      %p49 = por %p47, %p48
      %s51 = sadd.s32 %s50, 1
      %p54 = scmp.eq.s32.totalorder %s16, 1
      %p55 = scmp.ne.s32.totalorder %s50, %s52
      %p56 = scmp.eq.s32.totalorder %s16, 0
      %p57 = por %p55, %p56
      %p58 = scmp.ne.s32.totalorder %s50, %s52
      %p59 = scmp.eq.s32.totalorder %s21, 1
      %p60 = por %p58, %p59
      %p61 = scmp.ne.s32.totalorder %s52, %s53
      %p62 = scmp.eq.s32.totalorder %s21, 0
      %p63 = por %p61, %p62
      %p64 = scmp.ne.s32.totalorder %s52, %s53
      %p65 = scmp.eq.s32.totalorder %s22, 1
      %p66 = por %p64, %p65
      %p68 = scmp.ne.s32.totalorder %s53, %s67
      %p69 = scmp.eq.s32.totalorder %s22, 0
      %p70 = por %p68, %p69
      %s72 = sadd.s32 %s71, 1
      %p75 = scmp.eq.s32.totalorder %s16, 1
      %p76 = scmp.ne.s32.totalorder %s71, %s73
      %p77 = scmp.eq.s32.totalorder %s16, 0
      %p78 = por %p76, %p77
      %p79 = scmp.ne.s32.totalorder %s71, %s73
      %p80 = scmp.eq.s32.totalorder %s21, 1
      %p81 = por %p79, %p80
      %p82 = scmp.ne.s32.totalorder %s73, %s74
      %p83 = scmp.eq.s32.totalorder %s21, 0
      %p84 = por %p82, %p83
      %p85 = scmp.ne.s32.totalorder %s73, %s74
      %p86 = scmp.eq.s32.totalorder %s22, 1
      %p87 = por %p85, %p86
      %p89 = scmp.ne.s32.totalorder %s74, %s88
      %p90 = scmp.eq.s32.totalorder %s22, 0
      %p91 = por %p89, %p90
      %s92 = ssub.s32 %s16, %s23
      %p93 = scmp.eq.s32.totalorder %s92, 0
      %s95 = sadd.s32 %s94, 1
      %s96 = scalar_select %p93, %s94, %s95
      %p99 = pneg %p93
      %p100 = scmp.eq.s32.totalorder %s16, 1
      %p101 = por %p99, %p100
      %p102 = scmp.ne.s32.totalorder %s94, %s97
      %p103 = scmp.eq.s32.totalorder %s16, 0
      %p104 = por %p102, %p103
      %p105 = scmp.ne.s32.totalorder %s94, %s97
      %p106 = scmp.eq.s32.totalorder %s21, 1
      %p107 = por %p105, %p106
      %p108 = scmp.ne.s32.totalorder %s97, %s98
      %p109 = scmp.eq.s32.totalorder %s21, 0
      %p110 = por %p108, %p109
      %p111 = scmp.ne.s32.totalorder %s97, %s98
      %p112 = scmp.eq.s32.totalorder %s22, 1
      %p113 = por %p111, %p112
      %p115 = scmp.ne.s32.totalorder %s98, %s114
      %p116 = scmp.eq.s32.totalorder %s22, 0
      %p117 = por %p115, %p116
      %p118 = scmp.le.s32.totalorder 1, %s16
      %p119 = scmp.lt.s32.totalorder %s16, 3
      %p120 = pnand %p118, %p119
      %p121 = pneg %p120
      // Predicated region
      $region9: #{tpu_custom_call.1} parent=5 // pred_check
        _
      $region10: #{tpu_custom_call.1} parent=5 // pred_check_branch
        %123 = sbr.rel (%p120) target = $region12
      $region11: #{tpu_custom_call.1} parent=5 // pred_region
        %s124 = ssub.s32 %s16, 1
        // Predicated region
        $region13: #{tpu_custom_call.1} parent=11 // pred_check
          %p125 = pneg %p63
        $region14: #{tpu_custom_call.1} parent=11 // pred_check_branch
          %127 = sbr.rel (%p125) target = $region16
        $region15: #{tpu_custom_call.1} parent=11 // pred_region
          %s129 = ssub.s32 64, 64
          %130 = vsyncadd [#allocation6], %s129
          %s132 = sshll.u32 [#allocation5], 4
          %s133 = int_to_ptr.vmem [resolvable:$true] %s132
          %135 = dma.hbm_to_vmem [thread:$0]  %s1, 64, %s133, [#allocation6]
        $region16: #{tpu_custom_call.1} parent=11 // pred_fallthru
          _
        // Predicated region
        $region17: #{tpu_custom_call.1} parent=11 // pred_check
          %p136 = pneg %p84
        $region18: #{tpu_custom_call.1} parent=11 // pred_check_branch
          %138 = sbr.rel (%p136) target = $region20
        $region19: #{tpu_custom_call.1} parent=11 // pred_region
          _
        $region20: #{tpu_custom_call.1} parent=11 // pred_fallthru
          _
      $region12: #{tpu_custom_call.1} parent=5 // pred_fallthru
        _
      %p139 = scmp.lt.s32.totalorder %s16, 2
      // Predicated region
      $region21: #{tpu_custom_call.1} parent=5 // pred_check
        %p140 = pneg %p139
      $region22: #{tpu_custom_call.1} parent=5 // pred_check_branch
        %142 = sbr.rel (%p140) target = $region24
      $region23: #{tpu_custom_call.1} parent=5 // pred_region
        // Predicated region
        $region25: #{tpu_custom_call.1} parent=23 // pred_check
          %p143 = pneg %p36
        $region26: #{tpu_custom_call.1} parent=23 // pred_check_branch
          %145 = sbr.rel (%p143) target = $region28
        $region27: #{tpu_custom_call.1} parent=23 // pred_region
          %s146 = sand.u32 %s26, 1
          %s147 = scalar_lea.sflag [#allocation3], %s146
          %s148 = sand.u32 %s26, 1
          %s149 = smul.addr %s148, 16
          %s150 = scalar_lea.vmem [#allocation2], %s149
          %s152 = ssub.s32 256, 256
          %153 = vsyncadd %s147, %s152
          %s154 = smul.addr %s16, 2
          %s155 = smul.addr %s154, 128
          %s156 = scalar_lea.hbm %s0, %s155
          %s158 = sshll.u32 %s150, 4
          %s159 = int_to_ptr.vmem [resolvable:$true] %s158
          %161 = dma.hbm_to_vmem [thread:$0]  %s156, 256, %s159, %s147
        $region28: #{tpu_custom_call.1} parent=23 // pred_fallthru
          _
      $region24: #{tpu_custom_call.1} parent=5 // pred_fallthru
        _
      %p162 = scmp.le.s32.totalorder 1, %s16
      %p163 = scmp.lt.s32.totalorder %s16, 3
      %p164 = pnand %p162, %p163
      %p165 = pneg %p164
      // Predicated region
      $region29: #{tpu_custom_call.1} parent=5 // pred_check
        _
      $region30: #{tpu_custom_call.1} parent=5 // pred_check_branch
        %167 = sbr.rel (%p164) target = $region32
      $region31: #{tpu_custom_call.1} parent=5 // pred_region
        %s168 = ssub.s32 %s16, 1
        %s169 = sand.u32 %s29, 1
        %s170 = scalar_lea.sflag [#allocation3], %s169
        %s171 = sand.u32 %s29, 1
        %s172 = smul.addr %s171, 16
        %s173 = scalar_lea.vmem [#allocation2], %s172
        // Predicated region
        $region33: #{tpu_custom_call.1} parent=31 // pred_check
          %p174 = pneg %p42
        $region34: #{tpu_custom_call.1} parent=31 // pred_check_branch
          %176 = sbr.rel (%p174) target = $region36
        $region35: #{tpu_custom_call.1} parent=31 // pred_region
          %177 = dma.done %s170, 256
        $region36: #{tpu_custom_call.1} parent=31 // pred_fallthru
          _
        // Predicated region
        $region37: #{tpu_custom_call.1} parent=31 // pred_check
          %p178 = pneg %p63
        $region38: #{tpu_custom_call.1} parent=31 // pred_check_branch
          %180 = sbr.rel (%p178) target = $region40
        $region39: #{tpu_custom_call.1} parent=31 // pred_region
          %181 = dma.done [#allocation6], 64
        $region40: #{tpu_custom_call.1} parent=31 // pred_fallthru
          _
        %s182 = sand.u32 %s29, 1
        %s183 = scalar_lea.sflag [#allocation3], %s182
        %s184 = sand.u32 %s29, 1
        %s185 = smul.addr %s184, 16
        %s186 = scalar_lea.vmem [#allocation2], %s185
        %p187 = pneg %p42
        %p188 = pneg %p39
        %p189 = pneg %p63
        %p190 = pneg %p60
        %p191 = pneg %p84
        %p192 = pneg %p81
        %p193 = pneg %p110
        %p194 = pneg %p107
        %s195 = sand.u32 %s97, 1
        %s196 = scalar_lea.sflag [#allocation4], %s195
        %s197 = sand.u32 %s97, 1
        %s198 = smul.addr %s197, 16
        %s199 = scalar_lea.vmem [#allocation7], %s198
        %v200 = vld [vmem:[%s173] sm:$0xff]
        %v201 = vld [vmem:[%s173 + $0x8] sm:$0xff]
        %v202 = vld [vmem:[#allocation5] sm:$0xf]
        %v203 = vld [vmem:[%s2] sm:$0x1]
        %v205 = vlaneseq
        %v206 = vshrl.u32 %v205, 7
        %v207 = vsub.s32 0, %v206
        %v208 = vrot.slane %v202, %v207
        %v209 = vlaneseq
        %v210 = vshrl.u32 %v209, 7
        %v211 = vsub.s32 2, %v210
        %v212 = vrot.slane %v202, %v211
        %v215 = vlaneseq
        %v216 = vshrl.u32 %v215, 7
        %v217 = vsub.s32 0, %v216
        %v218 = vrot.slane %v208, %v217
        %v219 = vlaneseq
        %v220 = vshrl.u32 %v219, 7
        %v221 = vsub.s32 0, %v220
        %v222 = vrot.slane %v212, %v221
        %v223 = vmul.f32 %v200, %v218
        %v224 = vmul.f32 %v201, %v222
        %v225 = vadd.f32 %v223, %v224
        %226 = vadd.xlane.f32.xlu0 %v225
        %v227 = vpop.xlane.xlu0 %226
        %v228 = vmax.f32 %v227, 0.0
        %v230 = vlaneseq
        %v231 = vshrl.u32 %v230, 7
        %v232 = vsub.s32 0, %v231
        %v233 = vrot.slane %v203, %v232
        %v235 = vmul.f32 %v228, %v233
        %v236 = vadd.f32 %v235, 0.0
        %v237 = vlaneseq
        %v238 = vshrl.u32 %v237, 7
        %v239 = vsub.s32 1, %v238
        %v240 = vrot.slane %v202, %v239
        %v241 = vlaneseq
        %v242 = vshrl.u32 %v241, 7
        %v243 = vsub.s32 3, %v242
        %v244 = vrot.slane %v202, %v243
        %v247 = vlaneseq
        %v248 = vshrl.u32 %v247, 7
        %v249 = vsub.s32 1, %v248
        %v250 = vrot.slane %v240, %v249
        %v251 = vlaneseq
        %v252 = vshrl.u32 %v251, 7
        %v253 = vsub.s32 1, %v252
        %v254 = vrot.slane %v244, %v253
        %v255 = vmul.f32 %v200, %v250
        %v256 = vmul.f32 %v201, %v254
        %v257 = vadd.f32 %v255, %v256
        %258 = vadd.xlane.f32.xlu0 %v257
        %v259 = vpop.xlane.xlu0 %258
        %v260 = vmax.f32 %v259, 0.0
        %v261 = vmul.f32 %v260, %v233
        %263 = vrot.lane.b32.xlu0 %v261, 127
        %v264 = vpop.permute.xlu0 %263
        %v266 = vadd.f32 %v236, %v264
        %v267 = vsub.f32 0.0, %v266
        %v268 = vmul.f32 %v267, 1.442695
        %v269 = vpow.pop %v268
        %v270 = vadd.f32 %v269, 1.0
        %v271 = vrcp.pop %v270
        %273 = vset.pattern.permute.xlu0 0
        %274 = vperm.xlu0 %273, %v271
        %v275 = vpop.permute.xlu0 %274
        %v277 = vmul.f32 %v275, %v200
        %v278 = vmul.f32 %v275, %v201
        %279 = vst [vmem:[%s199] sm:$0xff] %v277
        %280 = vst [vmem:[%s199 + $0x8] sm:$0xff] %v278
        %s281 = sand.u32 %s97, 1
        %s282 = scalar_lea.sflag [#allocation4], %s281
        %s283 = sand.u32 %s97, 1
        %s284 = smul.addr %s283, 16
        %s285 = scalar_lea.vmem [#allocation7], %s284
        // Predicated region
        $region41: #{tpu_custom_call.1} parent=31 // pred_check
          %p286 = pneg %p107
        $region42: #{tpu_custom_call.1} parent=31 // pred_check_branch
          %288 = sbr.rel (%p286) target = $region44
        $region43: #{tpu_custom_call.1} parent=31 // pred_region
          %s290 = ssub.s32 256, 256
          %291 = vsyncadd %s282, %s290
          %s292 = smul.addr %s21, 2
          %s293 = smul.addr %s292, 128
          %s294 = scalar_lea.hbm %s3, %s293
          %s296 = sshll.u32 %s285, 4
          %s297 = int_to_ptr.vmem [resolvable:$true] %s296
          %299 = dma.vmem_to_hbm [thread:$0]  %s297, 256, %s294, %s282
        $region44: #{tpu_custom_call.1} parent=31 // pred_fallthru
          _
      $region32: #{tpu_custom_call.1} parent=5 // pred_fallthru
        _
      %p300 = scmp.le.s32.totalorder 2, %s16
      // Predicated region
      $region45: #{tpu_custom_call.1} parent=5 // pred_check
        %p301 = pneg %p300
      $region46: #{tpu_custom_call.1} parent=5 // pred_check_branch
        %303 = sbr.rel (%p301) target = $region48
      $region47: #{tpu_custom_call.1} parent=5 // pred_region
        %s304 = ssub.s32 %s16, 2
        // Predicated region
        $region49: #{tpu_custom_call.1} parent=47 // pred_check
          %p305 = pneg %p113
        $region50: #{tpu_custom_call.1} parent=47 // pred_check_branch
          %307 = sbr.rel (%p305) target = $region52
        $region51: #{tpu_custom_call.1} parent=47 // pred_region
          %s308 = sand.u32 %s98, 1
          %s309 = scalar_lea.sflag [#allocation4], %s308
          %s310 = sand.u32 %s98, 1
          %s311 = smul.addr %s310, 16
          %s312 = scalar_lea.vmem [#allocation7], %s311
          %313 = dma.done %s309, 256
        $region52: #{tpu_custom_call.1} parent=47 // pred_fallthru
          _
      $region48: #{tpu_custom_call.1} parent=5 // pred_fallthru
        _
    $region6: #{tpu_custom_call.1} parent=1 // loop_footer
      %s20 = sadd.s32 1, %s16
    $region7: #{tpu_custom_call.1} parent=1 // loop_footer_branch
      %15 = sbr.rel target = $region3
    $region8: #{tpu_custom_call.1} parent=1 // loop_exit
      _
    %314 = vsyncpa [#allocation3], 1
    %s315 = scalar_lea.sflag [#allocation3], 1
    %316 = vsyncpa %s315, 1
    %317 = vsyncpa [#allocation6], 1
    %318 = vsyncpa [#allocation4], 1
    %s319 = scalar_lea.sflag [#allocation4], 1
    %320 = vsyncpa %s319, 1

</llo_original>
